<compile_context>
chip_gen: v5e
topology: v5e:2x2
jax: 0.10.0
libtpu: 0.0.40
codegen_flags: <defaults>
</compile_context>

<pallas_src>
import functools

import jax
import jax.numpy as jnp
from jax.experimental import pallas as pl
from jax.experimental.pallas import tpu as pltpu

H_PAD = 128  # hidden dim 20 -> 128 (weights only; resident in VMEM, cost ~0)


def mlp_kernel(x_ref, w1_ref, b1_ref, w2_ref, b2_ref, o_ref):
    # (tb, F) @ (F, H_PAD) -> (tb, H_PAD), f32 accumulation on the MXU.
    x = x_ref[...]
    h = jnp.dot(x, w1_ref[...], preferred_element_type=jnp.float32)
    h = jnp.maximum(h + b1_ref[...], 0.0)                  # fused bias + ReLU (VPU)
    # (tb, H_PAD) @ (H_PAD, O) -> (tb, O); O = 2, stored un-padded.
    y = jnp.dot(h, w2_ref[...], preferred_element_type=jnp.float32)
    o_ref[...] = (y + b2_ref[...]).astype(o_ref.dtype)


def _cdiv(a, b):
    return (a + b - 1) // b


def _round_up(n, m):
    return ((n + m - 1) // m) * m


def _choose_tiling(B, tb_target):
    """Pick (tb, n_tiles, B_pad) with minimal batch padding (multiple of 8)."""
    B8 = _round_up(max(B, 1), 8)
    # Ensure >= 2 grid steps for larger batches so the "parallel" axis can
    # actually engage both TensorCores on v7x; keep 1 step for tiny batches
    # (grid machinery buys nothing at that size).
    min_tiles = 2 if B8 >= 1024 else 1
    n_tiles = max(min_tiles, _cdiv(B8, tb_target))
    tb = _round_up(_cdiv(B8, n_tiles), 8)
    B_pad = n_tiles * tb
    return tb, n_tiles, B_pad


@functools.partial(jax.jit, static_argnames=("tb_target",))
def mlp_forward(x, w1, b1, w2, b2, tb_target=8192):
    """y = relu(x @ w1 + b1) @ w2 + b2, weights stored as (in, out)."""
    B, F = x.shape
    H = w1.shape[1]
    O = w2.shape[1]

    tb, n_tiles, B_pad = _choose_tiling(B, tb_target)

    # Pad batch only to a multiple of the tile (itself a multiple of 8);
    # features/outputs are streamed at their real widths.
    if B_pad > B:
        x_in = jnp.zeros((B_pad, F), x.dtype).at[:B].set(x)
    else:
        x_in = x

    # Pad the (tiny, resident) hidden dimension to a lane-dense 128 so the
    # intermediate activation is a clean vreg tile; zero padding is exact.
    w1_p = jnp.zeros((F, H_PAD), w1.dtype).at[:, :H].set(w1)
    b1_p = jnp.zeros((1, H_PAD), b1.dtype).at[:, :H].set(b1)
    w2_p = jnp.zeros((H_PAD, O), w2.dtype).at[:H, :].set(w2)
    b2_p = b2.reshape(1, O)
    # TODO(synk): for very large B, cast x_in (and the output) to bf16 at this
    # boundary to halve the dominant HBM stream; kept f32 so the reference
    # check stays exact.

    grid = (n_tiles,)

    out = pl.pallas_call(
        mlp_kernel,
        out_shape=jax.ShapeDtypeStruct((B_pad, O), jnp.float32),
        grid_spec=pltpu.PrefetchScalarGridSpec(
            num_scalar_prefetch=0,
            grid=grid,
            in_specs=[
                pl.BlockSpec((tb, F), lambda i: (i, 0)),       # x: tiled over batch, real width
                pl.BlockSpec((F, H_PAD), lambda i: (0, 0)),    # w1: resident
                pl.BlockSpec((1, H_PAD), lambda i: (0, 0)),    # b1: resident
                pl.BlockSpec((H_PAD, O), lambda i: (0, 0)),    # w2: resident
                pl.BlockSpec((1, O), lambda i: (0, 0)),        # b2: resident
            ],
            out_specs=pl.BlockSpec((tb, O), lambda i: (i, 0)), # real output width (B, 2)
        ),
        compiler_params=pltpu.CompilerParams(
            dimension_semantics=("parallel",),   # megacore split on v7x
        ),
    )(x_in, w1_p, b1_p, w2_p, b2_p)

    # Drop padded batch rows (no-op slice when B == B_pad).
    return out[:B]


def init_params(key, n_features=10, hidden=20, n_out=2):
    # Deterministic synthetic init (PyTorch-style uniform bounds).
    k1, k2, k3, k4 = jax.random.split(key, 4)
    bound1 = 1.0 / jnp.sqrt(n_features)
    bound2 = 1.0 / jnp.sqrt(hidden)
    # Stored as (in, out) so the kernel does x @ W (equivalent to x @ W_pt.T).
    w1 = jax.random.uniform(k1, (n_features, hidden), jnp.float32, -bound1, bound1)
    b1 = jax.random.uniform(k2, (1, hidden), jnp.float32, -bound1, bound1)
    w2 = jax.random.uniform(k3, (hidden, n_out), jnp.float32, -bound2, bound2)
    b2 = jax.random.uniform(k4, (1, n_out), jnp.float32, -bound2, bound2)
    return w1, b1, w2, b2


if __name__ == "__main__":
    key = jax.random.PRNGKey(0)
    kx, kp = jax.random.split(key)

    n_features, hidden, n_out = 10, 20, 2
    batch = 8

    x = jax.random.normal(kx, (batch, n_features), dtype=jnp.float32)
    w1, b1, w2, b2 = init_params(kp, n_features, hidden, n_out)

    out = mlp_forward(x, w1, b1, w2, b2)
    jax.block_until_ready(out)

    # Reference check in plain JAX (same math).
    ref = jnp.maximum(x @ w1 + b1, 0.0) @ w2 + b2
    assert out.shape == (batch, n_out)
    assert jnp.allclose(out, ref, atol=1e-5, rtol=1e-5)

    # Also exercise a non-divisible / multi-tile batch to cover the tiling path.
    x_big = jax.random.normal(kx, (1234, n_features), dtype=jnp.float32)
    out_big = mlp_forward(x_big, w1, b1, w2, b2, tb_target=512)
    jax.block_until_ready(out_big)
    ref_big = jnp.maximum(x_big @ w1 + b1, 0.0) @ w2 + b2
    assert out_big.shape == (1234, n_out)
    assert jnp.allclose(out_big, ref_big, atol=1e-5, rtol=1e-5)

    print("KERNEL_OK")
</pallas_src>

<mosaic_0001>
module attributes {stable_mosaic.version = 11 : i64} {
  func.func @mlp_kernel(%arg0: i32, %arg1: memref<8x10xf32, #tpu.memory_space<vmem>>, %arg2: memref<10x128xf32, #tpu.memory_space<vmem>>, %arg3: memref<1x128xf32, #tpu.memory_space<vmem>>, %arg4: memref<128x2xf32, #tpu.memory_space<vmem>>, %arg5: memref<1x2xf32, #tpu.memory_space<vmem>>, %arg6: memref<8x2xf32, #tpu.memory_space<vmem>>) attributes {dimension_semantics = [#tpu.dimension_semantics<parallel>], iteration_bounds = array<i64: 1>, scalar_prefetch = 0 : i64, scratch_operands = 0 : i64, tpu.core_type = #tpu.core_type<tc>, window_params = [{transform_indices = @transform_0, window_bounds = array<i64: 8, 10>}, {pipeline_mode = #tpu.pipeline_mode<synchronous>, transform_indices = @transform_1, window_bounds = array<i64: 10, 128>}, {pipeline_mode = #tpu.pipeline_mode<synchronous>, transform_indices = @transform_2, window_bounds = array<i64: 1, 128>}, {pipeline_mode = #tpu.pipeline_mode<synchronous>, transform_indices = @transform_3, window_bounds = array<i64: 128, 2>}, {pipeline_mode = #tpu.pipeline_mode<synchronous>, transform_indices = @transform_4, window_bounds = array<i64: 1, 2>}, {transform_indices = @transform_5, window_bounds = array<i64: 8, 2>}]} {
    %c0 = arith.constant 0 : index
    %c0_0 = arith.constant 0 : index
    %0 = vector.load %arg1[%c0, %c0_0] : memref<8x10xf32, #tpu.memory_space<vmem>>, vector<8x10xf32>
    %c0_1 = arith.constant 0 : index
    %c0_2 = arith.constant 0 : index
    %1 = vector.load %arg2[%c0_1, %c0_2] : memref<10x128xf32, #tpu.memory_space<vmem>>, vector<10x128xf32>
    %cst = arith.constant dense<0.000000e+00> : vector<8x128xf32>
    %2 = tpu.matmul %0, %1, %cst {dimension_numbers = #tpu.dot_dimension_numbers<[1], [0], [0], [1], [0, 0, 1, 1], [], []>} : vector<8x10xf32>, vector<10x128xf32>, vector<8x128xf32> -> vector<8x128xf32>
    %c0_3 = arith.constant 0 : index
    %c0_4 = arith.constant 0 : index
    %3 = vector.load %arg3[%c0_3, %c0_4] : memref<1x128xf32, #tpu.memory_space<vmem>>, vector<1x128xf32>
    %4 = vector.broadcast %3 : vector<1x128xf32> to vector<8x128xf32>
    %5 = arith.addf %2, %4 : vector<8x128xf32>
    %cst_5 = arith.constant 0.000000e+00 : f32
    %6 = vector.broadcast %cst_5 : f32 to vector<8x128xf32>
    %7 = arith.maximumf %5, %6 : vector<8x128xf32>
    %c0_6 = arith.constant 0 : index
    %c0_7 = arith.constant 0 : index
    %8 = vector.load %arg4[%c0_6, %c0_7] : memref<128x2xf32, #tpu.memory_space<vmem>>, vector<128x2xf32>
    %cst_8 = arith.constant dense<0.000000e+00> : vector<8x2xf32>
    %9 = tpu.matmul %7, %8, %cst_8 {dimension_numbers = #tpu.dot_dimension_numbers<[1], [0], [0], [1], [0, 0, 1, 1], [], []>} : vector<8x128xf32>, vector<128x2xf32>, vector<8x2xf32> -> vector<8x2xf32>
    %c0_9 = arith.constant 0 : index
    %c0_10 = arith.constant 0 : index
    %10 = vector.load %arg5[%c0_9, %c0_10] : memref<1x2xf32, #tpu.memory_space<vmem>>, vector<1x2xf32>
    %11 = vector.broadcast %10 : vector<1x2xf32> to vector<8x2xf32>
    %12 = arith.addf %9, %11 : vector<8x2xf32>
    %c0_11 = arith.constant 0 : index
    %c0_12 = arith.constant 0 : index
    %13 = vector.load %arg6[%c0_11, %c0_12] : memref<8x2xf32, #tpu.memory_space<vmem>>, vector<8x2xf32>
    tpu.vector_store %arg6[%c0_11, %c0_12], %12 {strides = array<i32>} : memref<8x2xf32, #tpu.memory_space<vmem>>, vector<8x2xf32>,
    return
  }
  func.func @transform_0(%arg0: i32) -> (i32, i32) {
    %c0_i32 = arith.constant 0 : i32
    %c0_i32_0 = arith.constant 0 : i32
    return %arg0, %c0_i32 : i32, i32
  }
  func.func @transform_1(%arg0: i32) -> (i32, i32) {
    %c0_i32 = arith.constant 0 : i32
    %c0_i32_0 = arith.constant 0 : i32
    %c0_i32_1 = arith.constant 0 : i32
    return %c0_i32, %c0_i32_0 : i32, i32
  }
  func.func @transform_2(%arg0: i32) -> (i32, i32) {
    %c0_i32 = arith.constant 0 : i32
    %c0_i32_0 = arith.constant 0 : i32
    %c0_i32_1 = arith.constant 0 : i32
    return %c0_i32, %c0_i32_0 : i32, i32
  }
  func.func @transform_3(%arg0: i32) -> (i32, i32) {
    %c0_i32 = arith.constant 0 : i32
    %c0_i32_0 = arith.constant 0 : i32
    %c0_i32_1 = arith.constant 0 : i32
    return %c0_i32, %c0_i32_0 : i32, i32
  }
  func.func @transform_4(%arg0: i32) -> (i32, i32) {
    %c0_i32 = arith.constant 0 : i32
    %c0_i32_0 = arith.constant 0 : i32
    %c0_i32_1 = arith.constant 0 : i32
    return %c0_i32, %c0_i32_0 : i32, i32
  }
  func.func @transform_5(%arg0: i32) -> (i32, i32) {
    %c0_i32 = arith.constant 0 : i32
    %c0_i32_0 = arith.constant 0 : i32
    return %arg0, %c0_i32 : i32, i32
  }
}

</mosaic_0001>

<llo_original>
// kernel: mlp_forward.1
$region0: #{mlp_forward.1}
  #allocation0 [shape = 'u32[]', space=smem, size = 0x4, offset = 0x4, fixed_abs, tag = 'smem constant byte address 0x4 - core index']
  #allocation1 [shape = 'u32[72,128]{1,0:T(1,128)}', space=vmem, size = 0x9000, scoped, tag = 'internal scratch']
  %s0 = inlined_call_operand.vmem [shape: f32[8,10], index: 0, kind: input, shape index: {}]
  %s1 = inlined_call_operand.vmem [shape: f32[10,128], index: 1, kind: input, shape index: {}]
  %s2 = inlined_call_operand.vmem [shape: f32[1,128], index: 2, kind: input, shape index: {}]
  %s3 = inlined_call_operand.vmem [shape: f32[128,2], index: 3, kind: input, shape index: {}]
  %s4 = inlined_call_operand.vmem [shape: f32[1,2], index: 4, kind: input, shape index: {}]
  %s5 = inlined_call_operand.vmem [shape: f32[8,2], index: 5, kind: output, shape index: {}]
  %s6 = sld [smem:[#allocation0]]
  $region30: #{mlp_forward.1} parent=0
    _
  %s8 = ssub.s32 1, %s6
  %s9 = scalar_select 0, %s8, %s6
  // Predicated region
  $region2: #{mlp_forward.1} parent=0 // pred_check
    _
  $region3: #{mlp_forward.1} parent=0 // pred_check_branch
    %11 = sbr.rel (0) target = $region5
  $region4: #{mlp_forward.1} parent=0 // pred_region
    _
  $region5: #{mlp_forward.1} parent=0 // pred_fallthru
    _
  // Predicated region
  $region6: #{mlp_forward.1} parent=0 // pred_check
    _
  $region7: #{mlp_forward.1} parent=0 // pred_check_branch
    %13 = sbr.rel (0) target = $region9
  $region8: #{mlp_forward.1} parent=0 // pred_region
    _
  $region9: #{mlp_forward.1} parent=0 // pred_fallthru
    _
  // Predicated region
  $region10: #{mlp_forward.1} parent=0 // pred_check
    _
  $region11: #{mlp_forward.1} parent=0 // pred_check_branch
    %15 = sbr.rel (0) target = $region13
  $region12: #{mlp_forward.1} parent=0 // pred_region
    _
  $region13: #{mlp_forward.1} parent=0 // pred_fallthru
    _
  // Predicated region
  $region14: #{mlp_forward.1} parent=0 // pred_check
    _
  $region15: #{mlp_forward.1} parent=0 // pred_check_branch
    %17 = sbr.rel (0) target = $region17
  $region16: #{mlp_forward.1} parent=0 // pred_region
    _
  $region17: #{mlp_forward.1} parent=0 // pred_fallthru
    _
  // Predicated region
  $region18: #{mlp_forward.1} parent=0 // pred_check
    _
  $region19: #{mlp_forward.1} parent=0 // pred_check_branch
    %19 = sbr.rel (0) target = $region21
  $region20: #{mlp_forward.1} parent=0 // pred_region
    _
  $region21: #{mlp_forward.1} parent=0 // pred_fallthru
    _
  %v20 = vld [vmem:[%s0] sm:$0xff]
  %v21 = vld [vmem:[%s1] sm:$0xff]
  %v22 = vld [vmem:[%s1 + $0x8] sm:$0x3]
  %v23 = vld [vmem:[%s2] sm:$0x1]
  %v25 = vperm.slane %v23, 0
  %vm27 = vcmask 80896
  %v29 = vsel %vm27, %v20, 0
  %vm31 = vcmask 1041408
  %v33 = vsel %vm31, %v22, 0
  %35 = vmatpush.msra.mxu0 0.0
  %36 = vmatpush.msra.mxu0 0.0
  %37 = vmatpush.msra.mxu0 0.0
  %38 = vmatpush.msra.mxu0 0.0
  %39 = vmatpush.msra.mxu0 0.0
  %40 = vmatpush.msra.mxu0 0.0
  %41 = vmatpush.msra.mxu0 0.0
  %42 = vmatpush.msra.mxu0 0.0
  %43 = vmatpush.msra.mxu0 0.0
  %44 = vmatpush.msra.mxu0 0.0
  %45 = vmatpush.msra.mxu0 0.0
  %46 = vmatpush.msra.mxu0 0.0
  %47 = vmatpush.msra.mxu0 0.0
  %48 = vmatpush.msra.mxu0 0.0
  %49 = vmatpush.msra.mxu0 %v33
  %50 = vmatpush.msra.mxu0 %v21
  %51 = vmatmul.f32.gmra.mxu0 %v29
  %v52 = vpop.f32.mrf.mxu0
  %v53 = vadd.f32 %v25, %v52
  %54 = vdwg.mxu0
  %v55 = vmax.f32 %v53, 0.0
  %v56 = vld [vmem:[%s3] sm:$0xff]
  %v57 = vld [vmem:[%s3 + $0x8] sm:$0xff]
  %v58 = vld [vmem:[%s3 + $0x10] sm:$0xff]
  %v59 = vld [vmem:[%s3 + $0x18] sm:$0xff]
  %v60 = vld [vmem:[%s3 + $0x20] sm:$0xff]
  %v61 = vld [vmem:[%s3 + $0x28] sm:$0xff]
  %v62 = vld [vmem:[%s3 + $0x30] sm:$0xff]
  %v63 = vld [vmem:[%s3 + $0x38] sm:$0xff]
  %v64 = vld [vmem:[%s3 + $0x40] sm:$0xff]
  %v65 = vld [vmem:[%s3 + $0x48] sm:$0xff]
  %v66 = vld [vmem:[%s3 + $0x50] sm:$0xff]
  %v67 = vld [vmem:[%s3 + $0x58] sm:$0xff]
  %v68 = vld [vmem:[%s3 + $0x60] sm:$0xff]
  %v69 = vld [vmem:[%s3 + $0x68] sm:$0xff]
  %v70 = vld [vmem:[%s3 + $0x70] sm:$0xff]
  %v71 = vld [vmem:[%s3 + $0x78] sm:$0xff]
  %v72 = vld [vmem:[%s4] sm:$0x1]
  %v74 = vperm.slane %v72, 0
  %76 = vmatpush.msra.mxu0 %v71
  %77 = vmatpush.msra.mxu0 %v70
  %78 = vmatpush.msra.mxu0 %v69
  %79 = vmatpush.msra.mxu0 %v68
  %80 = vmatpush.msra.mxu0 %v67
  %81 = vmatpush.msra.mxu0 %v66
  %82 = vmatpush.msra.mxu0 %v65
  %83 = vmatpush.msra.mxu0 %v64
  %84 = vmatpush.msra.mxu0 %v63
  %85 = vmatpush.msra.mxu0 %v62
  %86 = vmatpush.msra.mxu0 %v61
  %87 = vmatpush.msra.mxu0 %v60
  %88 = vmatpush.msra.mxu0 %v59
  %89 = vmatpush.msra.mxu0 %v58
  %90 = vmatpush.msra.mxu0 %v57
  %91 = vmatpush.msra.mxu0 %v56
  %92 = vmatmul.f32.gmra.mxu0 %v55
  %v93 = vpop.f32.mrf.mxu0
  %v94 = vadd.f32 %v74, %v93
  %95 = vdwg.mxu0
  %vm96 = vcmask 15360
  %97 = vst.msk [vmem:[%s5] sm:$0xff] %vm96, %v94
  // Predicated region
  $region22: #{mlp_forward.1} parent=0 // pred_check
    _
  $region23: #{mlp_forward.1} parent=0 // pred_check_branch
    %99 = sbr.rel (0) target = $region25
  $region24: #{mlp_forward.1} parent=0 // pred_region
    _
  $region25: #{mlp_forward.1} parent=0 // pred_fallthru
    _
  // Predicated region
  $region26: #{mlp_forward.1} parent=0 // pred_check
    _
  $region27: #{mlp_forward.1} parent=0 // pred_check_branch
    %101 = sbr.rel (0) target = $region29
  $region28: #{mlp_forward.1} parent=0 // pred_region
    _
  $region29: #{mlp_forward.1} parent=0 // pred_fallthru
    _

</llo_original>
